<compile_context>
chip_gen: v5e
topology: v5e:2x2
jax: 0.10.0
libtpu: 0.0.40
codegen_flags: <defaults>
</compile_context>

<pallas_src>
import jax
import jax.numpy as jnp
from jax.experimental import pallas as pl
from jax.experimental.pallas import tpu as pltpu


def _node_structure(sw, n_node):
    # For node j (j = 2 .. n_node+1): predecessors are nodes [start, start+nrows)
    info = []
    for j in range(2, n_node + 2):
        nrows = min(j, sw)
        start = max(0, j - sw)
        info.append((start, nrows))
    return info


def _pair_structure(n_node):
    pairs = []
    for i in range(2, n_node + 1):
        for j in range(i + 1, n_node + 2):
            pairs.append((i, j))
    return pairs


def make_expected_depth_loss(sw, n_node, S, R, O, E, lane=128):
    node_info = _node_structure(sw, n_node)
    pairs = _pair_structure(n_node)
    assert len(pairs) == E
    NR = n_node * R
    S_pad = ((S + lane - 1) // lane) * lane
    G = S_pad // lane

    def kernel(alpha_ref, beta_ref, theta_ref, out_ref):
        # alpha_ref: (O, NR, lane)  beta_ref: (E, lane)
        # theta_ref: (1, lane)      out_ref:  (1, lane)

        # ---- row-wise max over ops (excluding last op), all nodes at once ----
        em = alpha_ref[0]                              # (NR, lane)
        for o in range(1, O - 1):
            em = jnp.maximum(em, alpha_ref[o])

        zero = jnp.zeros((1, lane), jnp.float32)
        depths = [zero, zero]                          # nodes 0, 1 have depth 0

        # ---- expected-depth DP over DAG nodes (static, fully unrolled) ----
        for k, (start, nrows) in enumerate(node_info):
            base = k * R
            rows = [em[base + r:base + r + 1, :] for r in range(nrows)]  # (1,lane)
            m = rows[0]
            for r in range(1, nrows):
                m = jnp.maximum(m, rows[r])
            es = [jnp.exp(rows[r] - m) for r in range(nrows)]
            denom = es[0]
            for r in range(1, nrows):
                denom = denom + es[r]
            inv = pl.reciprocal(denom, approx=True)
            # dj = 1 + sum_r p_r * depth[start+r]; nodes 0/1 have depth 0 -> skip
            acc = None
            for r in range(nrows):
                pred = start + r
                if pred >= 2:
                    term = es[r] * depths[pred]
                    acc = term if acc is None else acc + term
            if acc is None:
                dj = jnp.ones((1, lane), jnp.float32)
            else:
                dj = 1.0 + acc * inv
            depths.append(dj)

        # ---- softmax over this stage's beta edge logits (per lane) ----
        brows = [beta_ref[e:e + 1, :] for e in range(E)]
        bm = brows[0]
        for e in range(1, E):
            bm = jnp.maximum(bm, brows[e])
        bes = [jnp.exp(brows[e] - bm) for e in range(E)]
        bden = bes[0]
        for e in range(1, E):
            bden = bden + bes[e]
        binv = pl.reciprocal(bden, approx=True)

        i0, j0 = pairs[0]
        pacc = bes[0] * (depths[i0] + depths[j0])
        for e in range(1, E):
            i, j = pairs[e]
            pacc = pacc + bes[e] * (depths[i] + depths[j])
        depth = pacc * binv

        # lane-dense per-stage contribution theta[s] * depth[s]
        out_ref[...] = theta_ref[...] * depth

    grid_spec = pltpu.PrefetchScalarGridSpec(
        num_scalar_prefetch=0,
        grid=(G,),
        in_specs=[
            pl.BlockSpec((O, NR, lane), lambda g: (0, 0, g)),   # alpha, S on lanes
            pl.BlockSpec((E, lane), lambda g: (0, g)),          # beta logits
            pl.BlockSpec((1, lane), lambda g: (0, g)),          # theta
        ],
        out_specs=pl.BlockSpec((1, lane), lambda g: (0, g)),    # per-stage theta*depth
    )

    f = pl.pallas_call(
        kernel,
        out_shape=jax.ShapeDtypeStruct((1, S_pad), jnp.float32),
        grid_spec=grid_spec,
        compiler_params=pltpu.CompilerParams(
            dimension_semantics=("parallel",)),
    )

    def loss_fn(alpha_stacked, beta, theta):
        # alpha_stacked: (S*n_node, R, O), beta: (S, E), theta: (S,)
        a = alpha_stacked.astype(jnp.float32).reshape(S, n_node, R, O)
        a = jnp.transpose(a, (3, 1, 2, 0)).reshape(O, NR, S)     # (O, n_node*R, S)
        a = jnp.pad(a, ((0, 0), (0, 0), (0, S_pad - S)))
        b = jnp.transpose(beta.astype(jnp.float32))              # (E, S)
        b = jnp.pad(b, ((0, 0), (0, S_pad - S)))
        t = theta.astype(jnp.float32).reshape(1, S)
        t = jnp.pad(t, ((0, 0), (0, S_pad - S)))                 # padded theta = 0
        per_stage = f(a, b, t)                                   # (1, S_pad)
        # final reduction over stages done once in the wrapper (lane-dense output,
        # padded lanes contribute exactly 0 because theta there is 0)
        return jnp.sum(per_stage)

    return loss_fn


def reference_loss(alpha_list, beta, theta, sw, n_node):
    """Pure-JAX port of the PyTorch forward (for verification)."""
    S = theta.shape[0]
    loss = jnp.float32(0.0)
    for s in range(S):
        depths = [jnp.float32(0.0)] * (n_node + 2)
        for j in range(2, n_node + 2):
            a = alpha_list[s * n_node + (j - 2)]
            edge_max = jnp.max(a[:, :-1], axis=1)
            p = jax.nn.softmax(edge_max, axis=0)
            start = max(0, j - sw)
            dj = jnp.float32(0.0)
            for r in range(p.shape[0]):
                dj = dj + p[r] * (depths[start + r] + 1.0)
            depths[j] = dj
        bs = jax.nn.softmax(beta[s], axis=0)
        depth = jnp.float32(0.0)
        off = 0
        for i in range(2, n_node + 1):
            for jj in range(i + 1, n_node + 2):
                depth = depth + bs[off] * (depths[i] + depths[jj])
                off += 1
        loss = loss + theta[s] * depth
    return loss


if __name__ == "__main__":
    # Small, module-consistent shapes.
    sw, n_node, n_ops = 3, 4, 5
    theta = jnp.array([0.6, 0.4], dtype=jnp.float32)   # "parameter" from __init__
    S = theta.shape[0]
    R = min(n_node + 1, sw)
    E = n_node * (n_node - 1) // 2

    key = jax.random.PRNGKey(0)
    # Ragged alpha list: one (min(j, sw), n_ops) tensor per node per stage.
    alpha_list = []
    for s in range(S):
        for j in range(2, n_node + 2):
            key, sub = jax.random.split(key)
            alpha_list.append(
                jax.random.normal(sub, (min(j, sw), n_ops), dtype=jnp.float32))
    key, sub = jax.random.split(key)
    beta = jax.random.normal(sub, (S, E), dtype=jnp.float32)

    # Pad ragged alpha rows to R and stack -> (S*n_node, R, O).
    alpha_stacked = jnp.stack(
        [jnp.pad(a, ((0, R - a.shape[0]), (0, 0))) for a in alpha_list])

    loss_fn = make_expected_depth_loss(sw, n_node, S, R, n_ops, E)
    out = jax.block_until_ready(loss_fn(alpha_stacked, beta, theta))

    ref = reference_loss(alpha_list, beta, theta, sw, n_node)
    # tolerance covers pl.reciprocal(approx=True) perturbation; real bugs are O(1)
    assert jnp.allclose(out, ref, rtol=1e-3, atol=1e-3), (out, ref)
    print("KERNEL_OK")
</pallas_src>

<mosaic_0001>
module attributes {stable_mosaic.version = 11 : i64} {
  func.func @kernel(%arg0: i32, %arg1: memref<5x12x128xf32, #tpu.memory_space<vmem>>, %arg2: memref<6x128xf32, #tpu.memory_space<vmem>>, %arg3: memref<1x128xf32, #tpu.memory_space<vmem>>, %arg4: memref<1x128xf32, #tpu.memory_space<vmem>>) attributes {dimension_semantics = [#tpu.dimension_semantics<parallel>], iteration_bounds = array<i64: 1>, scalar_prefetch = 0 : i64, scratch_operands = 0 : i64, tpu.core_type = #tpu.core_type<tc>, window_params = [{transform_indices = @transform_0, window_bounds = array<i64: 5, 12, 128>}, {transform_indices = @transform_1, window_bounds = array<i64: 6, 128>}, {transform_indices = @transform_2, window_bounds = array<i64: 1, 128>}, {transform_indices = @transform_3, window_bounds = array<i64: 1, 128>}]} {
    %c0 = arith.constant 0 : index
    %c0_0 = arith.constant 0 : index
    %c0_1 = arith.constant 0 : index
    %0 = vector.load %arg1[%c0, %c0_0, %c0_1] : memref<5x12x128xf32, #tpu.memory_space<vmem>>, vector<1x12x128xf32>
    %1 = vector.shape_cast %0 : vector<1x12x128xf32> to vector<12x128xf32>
    %c1 = arith.constant 1 : index
    %c0_2 = arith.constant 0 : index
    %c0_3 = arith.constant 0 : index
    %2 = vector.load %arg1[%c1, %c0_2, %c0_3] : memref<5x12x128xf32, #tpu.memory_space<vmem>>, vector<1x12x128xf32>
    %3 = vector.shape_cast %2 : vector<1x12x128xf32> to vector<12x128xf32>
    %4 = arith.maximumf %1, %3 : vector<12x128xf32>
    %c2 = arith.constant 2 : index
    %c0_4 = arith.constant 0 : index
    %c0_5 = arith.constant 0 : index
    %5 = vector.load %arg1[%c2, %c0_4, %c0_5] : memref<5x12x128xf32, #tpu.memory_space<vmem>>, vector<1x12x128xf32>
    %6 = vector.shape_cast %5 : vector<1x12x128xf32> to vector<12x128xf32>
    %7 = arith.maximumf %4, %6 : vector<12x128xf32>
    %c3 = arith.constant 3 : index
    %c0_6 = arith.constant 0 : index
    %c0_7 = arith.constant 0 : index
    %8 = vector.load %arg1[%c3, %c0_6, %c0_7] : memref<5x12x128xf32, #tpu.memory_space<vmem>>, vector<1x12x128xf32>
    %9 = vector.shape_cast %8 : vector<1x12x128xf32> to vector<12x128xf32>
    %10 = arith.maximumf %7, %9 : vector<12x128xf32>
    %cst = arith.constant 1.000000e+00 : f32
    %11 = vector.broadcast %cst : f32 to vector<1x128xf32>
    %12 = vector.extract_strided_slice %10 {offsets = [3, 0], sizes = [1, 128], strides = [1, 1]} : vector<12x128xf32> to vector<1x128xf32>
    %13 = vector.extract_strided_slice %10 {offsets = [4, 0], sizes = [1, 128], strides = [1, 1]} : vector<12x128xf32> to vector<1x128xf32>
    %14 = vector.extract_strided_slice %10 {offsets = [5, 0], sizes = [1, 128], strides = [1, 1]} : vector<12x128xf32> to vector<1x128xf32>
    %15 = arith.maximumf %12, %13 : vector<1x128xf32>
    %16 = arith.maximumf %15, %14 : vector<1x128xf32>
    %17 = arith.subf %12, %16 : vector<1x128xf32>
    %18 = math.exp %17 : vector<1x128xf32>
    %19 = arith.subf %13, %16 : vector<1x128xf32>
    %20 = math.exp %19 : vector<1x128xf32>
    %21 = arith.subf %14, %16 : vector<1x128xf32>
    %22 = math.exp %21 : vector<1x128xf32>
    %23 = arith.addf %18, %20 : vector<1x128xf32>
    %24 = arith.addf %23, %22 : vector<1x128xf32>
    %25 = tpu.reciprocal %24 {approx = true} : vector<1x128xf32> -> vector<1x128xf32>
    %26 = arith.mulf %22, %11 : vector<1x128xf32>
    %27 = arith.mulf %26, %25 : vector<1x128xf32>
    %cst_8 = arith.constant 1.000000e+00 : f32
    %28 = vector.broadcast %cst_8 : f32 to vector<1x128xf32>
    %29 = arith.addf %28, %27 : vector<1x128xf32>
    %30 = vector.extract_strided_slice %10 {offsets = [6, 0], sizes = [1, 128], strides = [1, 1]} : vector<12x128xf32> to vector<1x128xf32>
    %31 = vector.extract_strided_slice %10 {offsets = [7, 0], sizes = [1, 128], strides = [1, 1]} : vector<12x128xf32> to vector<1x128xf32>
    %32 = vector.extract_strided_slice %10 {offsets = [8, 0], sizes = [1, 128], strides = [1, 1]} : vector<12x128xf32> to vector<1x128xf32>
    %33 = arith.maximumf %30, %31 : vector<1x128xf32>
    %34 = arith.maximumf %33, %32 : vector<1x128xf32>
    %35 = arith.subf %30, %34 : vector<1x128xf32>
    %36 = math.exp %35 : vector<1x128xf32>
    %37 = arith.subf %31, %34 : vector<1x128xf32>
    %38 = math.exp %37 : vector<1x128xf32>
    %39 = arith.subf %32, %34 : vector<1x128xf32>
    %40 = math.exp %39 : vector<1x128xf32>
    %41 = arith.addf %36, %38 : vector<1x128xf32>
    %42 = arith.addf %41, %40 : vector<1x128xf32>
    %43 = tpu.reciprocal %42 {approx = true} : vector<1x128xf32> -> vector<1x128xf32>
    %44 = arith.mulf %38, %11 : vector<1x128xf32>
    %45 = arith.mulf %40, %29 : vector<1x128xf32>
    %46 = arith.addf %44, %45 : vector<1x128xf32>
    %47 = arith.mulf %46, %43 : vector<1x128xf32>
    %cst_9 = arith.constant 1.000000e+00 : f32
    %48 = vector.broadcast %cst_9 : f32 to vector<1x128xf32>
    %49 = arith.addf %48, %47 : vector<1x128xf32>
    %50 = vector.extract_strided_slice %10 {offsets = [9, 0], sizes = [1, 128], strides = [1, 1]} : vector<12x128xf32> to vector<1x128xf32>
    %51 = vector.extract_strided_slice %10 {offsets = [10, 0], sizes = [1, 128], strides = [1, 1]} : vector<12x128xf32> to vector<1x128xf32>
    %52 = vector.extract_strided_slice %10 {offsets = [11, 0], sizes = [1, 128], strides = [1, 1]} : vector<12x128xf32> to vector<1x128xf32>
    %53 = arith.maximumf %50, %51 : vector<1x128xf32>
    %54 = arith.maximumf %53, %52 : vector<1x128xf32>
    %55 = arith.subf %50, %54 : vector<1x128xf32>
    %56 = math.exp %55 : vector<1x128xf32>
    %57 = arith.subf %51, %54 : vector<1x128xf32>
    %58 = math.exp %57 : vector<1x128xf32>
    %59 = arith.subf %52, %54 : vector<1x128xf32>
    %60 = math.exp %59 : vector<1x128xf32>
    %61 = arith.addf %56, %58 : vector<1x128xf32>
    %62 = arith.addf %61, %60 : vector<1x128xf32>
    %63 = tpu.reciprocal %62 {approx = true} : vector<1x128xf32> -> vector<1x128xf32>
    %64 = arith.mulf %56, %11 : vector<1x128xf32>
    %65 = arith.mulf %58, %29 : vector<1x128xf32>
    %66 = arith.addf %64, %65 : vector<1x128xf32>
    %67 = arith.mulf %60, %49 : vector<1x128xf32>
    %68 = arith.addf %66, %67 : vector<1x128xf32>
    %69 = arith.mulf %68, %63 : vector<1x128xf32>
    %cst_10 = arith.constant 1.000000e+00 : f32
    %70 = vector.broadcast %cst_10 : f32 to vector<1x128xf32>
    %71 = arith.addf %70, %69 : vector<1x128xf32>
    %c0_11 = arith.constant 0 : index
    %c0_12 = arith.constant 0 : index
    %72 = vector.load %arg2[%c0_11, %c0_12] : memref<6x128xf32, #tpu.memory_space<vmem>>, vector<1x128xf32>
    %c1_13 = arith.constant 1 : index
    %c0_14 = arith.constant 0 : index
    %73 = vector.load %arg2[%c1_13, %c0_14] : memref<6x128xf32, #tpu.memory_space<vmem>>, vector<1x128xf32>
    %c2_15 = arith.constant 2 : index
    %c0_16 = arith.constant 0 : index
    %74 = vector.load %arg2[%c2_15, %c0_16] : memref<6x128xf32, #tpu.memory_space<vmem>>, vector<1x128xf32>
    %c3_17 = arith.constant 3 : index
    %c0_18 = arith.constant 0 : index
    %75 = vector.load %arg2[%c3_17, %c0_18] : memref<6x128xf32, #tpu.memory_space<vmem>>, vector<1x128xf32>
    %c4 = arith.constant 4 : index
    %c0_19 = arith.constant 0 : index
    %76 = vector.load %arg2[%c4, %c0_19] : memref<6x128xf32, #tpu.memory_space<vmem>>, vector<1x128xf32>
    %c5 = arith.constant 5 : index
    %c0_20 = arith.constant 0 : index
    %77 = vector.load %arg2[%c5, %c0_20] : memref<6x128xf32, #tpu.memory_space<vmem>>, vector<1x128xf32>
    %78 = arith.maximumf %72, %73 : vector<1x128xf32>
    %79 = arith.maximumf %78, %74 : vector<1x128xf32>
    %80 = arith.maximumf %79, %75 : vector<1x128xf32>
    %81 = arith.maximumf %80, %76 : vector<1x128xf32>
    %82 = arith.maximumf %81, %77 : vector<1x128xf32>
    %83 = arith.subf %72, %82 : vector<1x128xf32>
    %84 = math.exp %83 : vector<1x128xf32>
    %85 = arith.subf %73, %82 : vector<1x128xf32>
    %86 = math.exp %85 : vector<1x128xf32>
    %87 = arith.subf %74, %82 : vector<1x128xf32>
    %88 = math.exp %87 : vector<1x128xf32>
    %89 = arith.subf %75, %82 : vector<1x128xf32>
    %90 = math.exp %89 : vector<1x128xf32>
    %91 = arith.subf %76, %82 : vector<1x128xf32>
    %92 = math.exp %91 : vector<1x128xf32>
    %93 = arith.subf %77, %82 : vector<1x128xf32>
    %94 = math.exp %93 : vector<1x128xf32>
    %95 = arith.addf %84, %86 : vector<1x128xf32>
    %96 = arith.addf %95, %88 : vector<1x128xf32>
    %97 = arith.addf %96, %90 : vector<1x128xf32>
    %98 = arith.addf %97, %92 : vector<1x128xf32>
    %99 = arith.addf %98, %94 : vector<1x128xf32>
    %100 = tpu.reciprocal %99 {approx = true} : vector<1x128xf32> -> vector<1x128xf32>
    %101 = arith.addf %11, %29 : vector<1x128xf32>
    %102 = arith.mulf %84, %101 : vector<1x128xf32>
    %103 = arith.addf %11, %49 : vector<1x128xf32>
    %104 = arith.mulf %86, %103 : vector<1x128xf32>
    %105 = arith.addf %102, %104 : vector<1x128xf32>
    %106 = arith.addf %11, %71 : vector<1x128xf32>
    %107 = arith.mulf %88, %106 : vector<1x128xf32>
    %108 = arith.addf %105, %107 : vector<1x128xf32>
    %109 = arith.addf %29, %49 : vector<1x128xf32>
    %110 = arith.mulf %90, %109 : vector<1x128xf32>
    %111 = arith.addf %108, %110 : vector<1x128xf32>
    %112 = arith.addf %29, %71 : vector<1x128xf32>
    %113 = arith.mulf %92, %112 : vector<1x128xf32>
    %114 = arith.addf %111, %113 : vector<1x128xf32>
    %115 = arith.addf %49, %71 : vector<1x128xf32>
    %116 = arith.mulf %94, %115 : vector<1x128xf32>
    %117 = arith.addf %114, %116 : vector<1x128xf32>
    %118 = arith.mulf %117, %100 : vector<1x128xf32>
    %c0_21 = arith.constant 0 : index
    %c0_22 = arith.constant 0 : index
    %119 = vector.load %arg3[%c0_21, %c0_22] : memref<1x128xf32, #tpu.memory_space<vmem>>, vector<1x128xf32>
    %120 = arith.mulf %119, %118 : vector<1x128xf32>
    %c0_23 = arith.constant 0 : index
    %c0_24 = arith.constant 0 : index
    %121 = vector.load %arg4[%c0_23, %c0_24] : memref<1x128xf32, #tpu.memory_space<vmem>>, vector<1x128xf32>
    tpu.vector_store %arg4[%c0_23, %c0_24], %120 {strides = array<i32>} : memref<1x128xf32, #tpu.memory_space<vmem>>, vector<1x128xf32>,
    return
  }
  func.func @transform_0(%arg0: i32) -> (i32, i32, i32) {
    %c0_i32 = arith.constant 0 : i32
    %c0_i32_0 = arith.constant 0 : i32
    %c0_i32_1 = arith.constant 0 : i32
    return %c0_i32, %c0_i32_0, %arg0 : i32, i32, i32
  }
  func.func @transform_1(%arg0: i32) -> (i32, i32) {
    %c0_i32 = arith.constant 0 : i32
    %c0_i32_0 = arith.constant 0 : i32
    return %c0_i32, %arg0 : i32, i32
  }
  func.func @transform_2(%arg0: i32) -> (i32, i32) {
    %c0_i32 = arith.constant 0 : i32
    %c0_i32_0 = arith.constant 0 : i32
    return %c0_i32, %arg0 : i32, i32
  }
  func.func @transform_3(%arg0: i32) -> (i32, i32) {
    %c0_i32 = arith.constant 0 : i32
    %c0_i32_0 = arith.constant 0 : i32
    return %c0_i32, %arg0 : i32, i32
  }
}

</mosaic_0001>

<llo_original>
// kernel: tpu_custom_call.1
$region0: #{tpu_custom_call.1}
  #allocation0 [shape = 'u32[]', space=smem, size = 0x4, offset = 0x4, fixed_abs, tag = 'smem constant byte address 0x4 - core index']
  #allocation1 [shape = 'u32[72,128]{1,0:T(1,128)}', space=vmem, size = 0x9000, scoped, tag = 'internal scratch']
  %s0 = inlined_call_operand.hbm [shape: f32[5,12,128], index: 0, kind: input, shape index: {}]
  %s1 = inlined_call_operand.hbm [shape: f32[6,128], index: 1, kind: input, shape index: {}]
  %s2 = inlined_call_operand.vmem [shape: f32[1,128], index: 2, kind: input, shape index: {}]
  %s3 = inlined_call_operand.hbm [shape: f32[1,128], index: 3, kind: output, shape index: {}]
  %s4 = sld [smem:[#allocation0]]
  $region30: #{tpu_custom_call.1} parent=0
    _
  %s6 = ssub.s32 1, %s4
  %s7 = scalar_select 0, %s6, %s4
  $region1: #{tpu_custom_call.1} parent=0
    #allocation2 [shape = 'u8[40960]{0}', space=vmem, size = 0xa000, scoped, tag = 'input window, operand 0, single buffered']
    #allocation3 [shape = 's32[1]{0}', space=sflag, size = 0x4, scoped, tag = 'scoped memory for tpu_custom_call.1']
    #allocation4 [shape = 's32[1]{0}', space=sflag, size = 0x4, scoped, tag = 'scoped memory for tpu_custom_call.1']
    #allocation5 [shape = 'u8[4096]{0}', space=vmem, size = 0x1000, scoped, tag = 'input window, operand 1, single buffered']
    #allocation6 [shape = 's32[1]{0}', space=sflag, size = 0x4, scoped, tag = 'scoped memory for tpu_custom_call.1']
    #allocation7 [shape = 'u8[512]{0}', space=vmem, size = 0x400, scoped, tag = 'output window, operand 0, single buffered']
    %8 = vsyncpa [#allocation3], 0
    %9 = vsyncpa [#allocation6], 0
    %10 = vsyncpa [#allocation4], 0
    // Predicated region
    $region2: #{tpu_custom_call.1} parent=1 // pred_check
      _
    $region3: #{tpu_custom_call.1} parent=1 // pred_check_branch
      %12 = sbr.rel (0) target = $region5
    $region4: #{tpu_custom_call.1} parent=1 // pred_region
      %14 = vsyncadd [#allocation3], 0
      %s15 = sshll.u32 %s0, 4
      %s16 = int_to_ptr.hbm [resolvable:$true] %s15
      %s17 = sshll.u32 [#allocation2], 4
      %s18 = int_to_ptr.vmem [resolvable:$true] %s17
      %23 = dma.hbm_to_vmem [thread:$0]  %s16, 1280, %s18, [#allocation3], 128, 128, 8
    $region5: #{tpu_custom_call.1} parent=1 // pred_fallthru
      _
    // Predicated region
    $region6: #{tpu_custom_call.1} parent=1 // pred_check
      _
    $region7: #{tpu_custom_call.1} parent=1 // pred_check_branch
      %25 = sbr.rel (0) target = $region9
    $region8: #{tpu_custom_call.1} parent=1 // pred_region
      %27 = vsyncadd [#allocation6], 0
      %s29 = sshll.u32 %s1, 4
      %s30 = int_to_ptr.hbm [resolvable:$true] %s29
      %s31 = sshll.u32 [#allocation5], 4
      %s32 = int_to_ptr.vmem [resolvable:$true] %s31
      %34 = dma.hbm_to_vmem [thread:$0]  %s30, 128, %s32, [#allocation6]
    $region9: #{tpu_custom_call.1} parent=1 // pred_fallthru
      _
    // Predicated region
    $region10: #{tpu_custom_call.1} parent=1 // pred_check
      _
    $region11: #{tpu_custom_call.1} parent=1 // pred_check_branch
      %36 = sbr.rel (0) target = $region13
    $region12: #{tpu_custom_call.1} parent=1 // pred_region
      _
    $region13: #{tpu_custom_call.1} parent=1 // pred_fallthru
      _
    // Predicated region
    $region14: #{tpu_custom_call.1} parent=1 // pred_check
      _
    $region15: #{tpu_custom_call.1} parent=1 // pred_check_branch
      %38 = sbr.rel (0) target = $region17
    $region16: #{tpu_custom_call.1} parent=1 // pred_region
      %40 = dma.done [#allocation3], 1280
    $region17: #{tpu_custom_call.1} parent=1 // pred_fallthru
      _
    // Predicated region
    $region18: #{tpu_custom_call.1} parent=1 // pred_check
      _
    $region19: #{tpu_custom_call.1} parent=1 // pred_check_branch
      %42 = sbr.rel (0) target = $region21
    $region20: #{tpu_custom_call.1} parent=1 // pred_region
      %44 = dma.done [#allocation6], 128
    $region21: #{tpu_custom_call.1} parent=1 // pred_fallthru
      _
    %v45 = vld [vmem:[#allocation2] sm:$0xff]
    %v46 = vld [vmem:[#allocation2 + $0x8] sm:$0xf]
    %s47 = scalar_lea.vmem [#allocation2], 16
    %v48 = vld [vmem:[%s47] sm:$0xff]
    %v49 = vld [vmem:[%s47 + $0x8] sm:$0xf]
    %v50 = vmax.f32 %v45, %v48
    %v51 = vmax.f32 %v46, %v49
    %s52 = scalar_lea.vmem [#allocation2], 32
    %v53 = vld [vmem:[%s52] sm:$0xff]
    %v54 = vld [vmem:[%s52 + $0x8] sm:$0xf]
    %v55 = vmax.f32 %v50, %v53
    %v56 = vmax.f32 %v51, %v54
    %s57 = scalar_lea.vmem [#allocation2], 48
    %v58 = vld [vmem:[%s57] sm:$0xff]
    %v59 = vld [vmem:[%s57 + $0x8] sm:$0xf]
    %v60 = vmax.f32 %v55, %v58
    %v61 = vmax.f32 %v56, %v59
    %v63 = vrot.slane %v60, 1
    %v65 = vmax.f32 %v60, %v63
    %v66 = vrot.slane %v60, 2
    %v68 = vmax.f32 %v65, %v66
    %v69 = vsub.f32 %v60, %v68
    %v70 = vmul.f32 %v69, 1.442695
    %v71 = vpow.pop %v70
    %v73 = vrot.slane %v68, 7
    %v75 = vsub.f32 %v60, %v73
    %v76 = vmul.f32 %v75, 1.442695
    %v77 = vpow.pop %v76
    %v78 = vrot.slane %v68, 6
    %v80 = vsub.f32 %v60, %v78
    %v81 = vmul.f32 %v80, 1.442695
    %v82 = vpow.pop %v81
    %v84 = vrot.slane %v77, 1
    %v86 = vadd.f32 %v71, %v84
    %v88 = vrot.slane %v82, 2
    %v90 = vadd.f32 %v86, %v88
    %v91 = vrcp.pop %v90
    %v93 = vrot.slane %v91, 6
    %v95 = vmul.f32 %v82, %v93
    %v96 = vadd.f32 %v95, 1.0
    %v98 = vrot.slane %v61, 2
    %v100 = vmax.f32 %v65, %v98
    %v101 = vsub.f32 %v60, %v100
    %v102 = vmul.f32 %v101, 1.442695
    %v103 = vpow.pop %v102
    %v105 = vrot.slane %v100, 7
    %v107 = vsub.f32 %v60, %v105
    %v108 = vmul.f32 %v107, 1.442695
    %v109 = vpow.pop %v108
    %v110 = vrot.slane %v100, 6
    %v112 = vsub.f32 %v61, %v110
    %v113 = vmul.f32 %v112, 1.442695
    %v114 = vpow.pop %v113
    %v116 = vrot.slane %v109, 1
    %v118 = vadd.f32 %v103, %v116
    %v120 = vrot.slane %v114, 2
    %v122 = vadd.f32 %v118, %v120
    %v123 = vrcp.pop %v122
    %v125 = vrot.slane %v96, 5
    %v127 = vmul.f32 %v114, %v125
    %v129 = vrot.slane %v127, 1
    %v131 = vadd.f32 %v109, %v129
    %v133 = vrot.slane %v123, 7
    %v135 = vmul.f32 %v131, %v133
    %v136 = vadd.f32 %v135, 1.0
    %v137 = vrot.slane %v61, 1
    %v139 = vmax.f32 %v61, %v137
    %v140 = vmax.f32 %v139, %v98
    %v141 = vsub.f32 %v61, %v140
    %v142 = vmul.f32 %v141, 1.442695
    %v143 = vpow.pop %v142
    %v145 = vrot.slane %v140, 7
    %v147 = vsub.f32 %v61, %v145
    %v148 = vmul.f32 %v147, 1.442695
    %v149 = vpow.pop %v148
    %v150 = vrot.slane %v140, 6
    %v152 = vsub.f32 %v61, %v150
    %v153 = vmul.f32 %v152, 1.442695
    %v154 = vpow.pop %v153
    %v156 = vrot.slane %v149, 1
    %v158 = vadd.f32 %v143, %v156
    %v160 = vrot.slane %v154, 2
    %v162 = vadd.f32 %v158, %v160
    %v163 = vrcp.pop %v162
    %v164 = vrot.slane %v96, 3
    %v166 = vmul.f32 %v149, %v164
    %v168 = vrot.slane %v166, 1
    %v170 = vadd.f32 %v143, %v168
    %v172 = vrot.slane %v136, 4
    %v174 = vmul.f32 %v154, %v172
    %v176 = vrot.slane %v174, 2
    %v178 = vadd.f32 %v170, %v176
    %v179 = vmul.f32 %v178, %v163
    %v180 = vadd.f32 %v179, 1.0
    %v181 = vld [vmem:[#allocation5] sm:$0x1]
    %v182 = vld [vmem:[#allocation5 + $0x1] sm:$0x1]
    %v183 = vld [vmem:[#allocation5 + $0x2] sm:$0x1]
    %v184 = vld [vmem:[#allocation5 + $0x3] sm:$0x1]
    %v185 = vld [vmem:[#allocation5 + $0x4] sm:$0x1]
    %v186 = vld [vmem:[#allocation5 + $0x5] sm:$0x1]
    %v187 = vmax.f32 %v181, %v182
    %v188 = vmax.f32 %v187, %v183
    %v189 = vmax.f32 %v188, %v184
    %v190 = vmax.f32 %v189, %v185
    %v191 = vmax.f32 %v190, %v186
    %v192 = vsub.f32 %v181, %v191
    %v193 = vmul.f32 %v192, 1.442695
    %v194 = vpow.pop %v193
    %v195 = vsub.f32 %v182, %v191
    %v196 = vmul.f32 %v195, 1.442695
    %v197 = vpow.pop %v196
    %v198 = vsub.f32 %v183, %v191
    %v199 = vmul.f32 %v198, 1.442695
    %v200 = vpow.pop %v199
    %v201 = vsub.f32 %v184, %v191
    %v202 = vmul.f32 %v201, 1.442695
    %v203 = vpow.pop %v202
    %v204 = vsub.f32 %v185, %v191
    %v205 = vmul.f32 %v204, 1.442695
    %v206 = vpow.pop %v205
    %v207 = vsub.f32 %v186, %v191
    %v208 = vmul.f32 %v207, 1.442695
    %v209 = vpow.pop %v208
    %v210 = vadd.f32 %v194, %v197
    %v211 = vadd.f32 %v210, %v200
    %v212 = vadd.f32 %v211, %v203
    %v213 = vadd.f32 %v212, %v206
    %v214 = vadd.f32 %v213, %v209
    %v215 = vrcp.pop %v214
    %v216 = vadd.f32 %v96, 1.0
    %v218 = vrot.slane %v216, 5
    %v220 = vmul.f32 %v194, %v218
    %v221 = vadd.f32 %v136, 1.0
    %v223 = vrot.slane %v221, 7
    %v225 = vmul.f32 %v197, %v223
    %v226 = vadd.f32 %v220, %v225
    %v227 = vadd.f32 %v180, 1.0
    %v229 = vrot.slane %v227, 1
    %v231 = vmul.f32 %v200, %v229
    %v232 = vadd.f32 %v226, %v231
    %v233 = vrot.slane %v136, 2
    %v235 = vadd.f32 %v96, %v233
    %v237 = vrot.slane %v235, 5
    %v239 = vmul.f32 %v203, %v237
    %v240 = vadd.f32 %v232, %v239
    %v242 = vrot.slane %v180, 4
    %v244 = vadd.f32 %v96, %v242
    %v246 = vrot.slane %v244, 5
    %v248 = vmul.f32 %v206, %v246
    %v249 = vadd.f32 %v240, %v248
    %v250 = vrot.slane %v180, 2
    %v252 = vadd.f32 %v136, %v250
    %v254 = vrot.slane %v252, 7
    %v256 = vmul.f32 %v209, %v254
    %v257 = vadd.f32 %v249, %v256
    %v258 = vmul.f32 %v257, %v215
    %v259 = vld [vmem:[%s2] sm:$0x1]
    %v260 = vmul.f32 %v259, %v258
    %261 = vst [vmem:[#allocation7] sm:$0x1] %v260
    // Predicated region
    $region22: #{tpu_custom_call.1} parent=1 // pred_check
      _
    $region23: #{tpu_custom_call.1} parent=1 // pred_check_branch
      %263 = sbr.rel (0) target = $region25
    $region24: #{tpu_custom_call.1} parent=1 // pred_region
      %265 = vsyncadd [#allocation4], 0
      %s267 = sshll.u32 [#allocation7], 4
      %s268 = int_to_ptr.vmem [resolvable:$true] %s267
      %s269 = sshll.u32 %s3, 4
      %s270 = int_to_ptr.hbm [resolvable:$true] %s269
      %272 = dma.vmem_to_hbm [thread:$0]  %s268, 16, %s270, [#allocation4]
    $region25: #{tpu_custom_call.1} parent=1 // pred_fallthru
      _
    // Predicated region
    $region26: #{tpu_custom_call.1} parent=1 // pred_check
      _
    $region27: #{tpu_custom_call.1} parent=1 // pred_check_branch
      %274 = sbr.rel (0) target = $region29
    $region28: #{tpu_custom_call.1} parent=1 // pred_region
      %276 = dma.done [#allocation4], 16
    $region29: #{tpu_custom_call.1} parent=1 // pred_fallthru
      _
    %277 = vsyncpa [#allocation3], 1
    %278 = vsyncpa [#allocation6], 1
    %279 = vsyncpa [#allocation4], 1

</llo_original>
